<compile_context>
chip_gen: v5e
topology: v5e:2x2
jax: 0.10.0
libtpu: 0.0.40
codegen_flags: <defaults>
</compile_context>

<pallas_src>
import jax
import jax.numpy as jnp
from jax.experimental import pallas as pl
from jax.experimental.pallas import tpu as pltpu

# ---- configuration mirroring Embeddings.__init__ --------------------------
WORD_VEC_SIZE = 32          # word_vec_size
WORD_VOCAB    = 50          # word_vocab_size
WORD_PAD      = 1           # word_padding_idx
FEAT_VOCABS   = [20]        # feat_vocab_sizes
FEAT_PADS     = [0]         # feat_padding_idx
FEAT_VEC_EXP  = 0.7
FEAT_DIMS     = [int(v ** FEAT_VEC_EXP) for v in FEAT_VOCABS]   # [8]
EMB_SIZE      = WORD_VEC_SIZE + sum(FEAT_DIMS)                  # concat -> 40
SEQ_LEN       = 8
BATCH         = 2
NFEAT         = 1 + len(FEAT_VOCABS)                            # 2


def _round_up(x, m):
    return (x + m - 1) // m * m


def make_positional_encoding(max_len, dim):
    """Exact reproduction of THIS module's PositionalEncoding buffer.

    Note: this (old OpenNMT) construction intentionally differs from the
    canonical Vaswani formulation: div_term has length `dim` (exponent 2j/dim)
    and sin/cos are applied to even/odd columns with their own frequencies.
    """
    pos = jnp.arange(max_len, dtype=jnp.float32)[:, None]                    # (L,1)
    div_term = 1.0 / jnp.power(
        10000.0, jnp.arange(0, dim * 2, 2, dtype=jnp.float32) / float(dim))  # (dim,)
    pe = pos * div_term[None, :]                                             # (L,dim)
    pe = pe.at[:, 0::2].set(jnp.sin(pe[:, 0::2]))
    pe = pe.at[:, 1::2].set(jnp.cos(pe[:, 1::2]))
    return pe                                                                # (L,dim)


def build_combined_table(word_table, feat_tables, pe_table):
    """Block-diagonal [word | feats] table with PE rows appended, zero-padded
    to lane-dense (K_PAD, EMB_PAD), cast to bf16 for the MXU.  padding_idx
    rows are already zero in the individual tables, so
    nn.Embedding(padding_idx=...) semantics carry over."""
    vw, dw = word_table.shape
    dims = [dw] + [t.shape[1] for t in feat_tables]
    emb_size = sum(dims)
    n_pe = pe_table.shape[0]
    k = vw + sum(t.shape[0] for t in feat_tables) + n_pe
    k_pad = _round_up(max(k, 128), 128)
    e_pad = _round_up(max(emb_size, 128), 128)

    tbl = jnp.zeros((k_pad, e_pad), jnp.float32)
    r, c = 0, 0
    tbl = tbl.at[r:r + vw, c:c + dw].set(word_table.astype(jnp.float32))
    r, c = r + vw, c + dw
    for t in feat_tables:
        v, d = t.shape
        tbl = tbl.at[r:r + v, c:c + d].set(t.astype(jnp.float32))
        r, c = r + v, c + d
    tbl = tbl.at[r:r + n_pe, 0:emb_size].set(pe_table.astype(jnp.float32))
    return tbl.astype(jnp.bfloat16), emb_size


def _embedding_kernel(idx_ref, table_ref, out_ref):
    """Multi-hot (word | feats | position) rows @ combined bf16 table.

    idx_ref already carries fully-offset row indices per column (host-side
    fusion), so each column is a single equality compare -- no integer
    divides, no iota position reconstruction.
    """
    t = idx_ref.shape[0]
    k = table_ref.shape[0]
    idx = idx_ref[...]                                        # (T, ncols) int32
    col = jax.lax.broadcasted_iota(jnp.int32, (t, k), 1)      # (T, K)

    # in-range indices assumed; out-of-range would zero-fill or alias another
    # band -- nn.Embedding would raise instead.
    hot = col == idx[:, 0:1]
    for c in range(1, idx_ref.shape[1]):                      # static loop
        hot = hot | (col == idx[:, c:c + 1])

    onehot = hot.astype(jnp.bfloat16)                         # 0/1 exact in bf16
    out_ref[...] = jnp.dot(onehot, table_ref[...],
                           preferred_element_type=jnp.float32)


def embeddings_forward(indices, word_table, feat_tables, pe_table, *,
                       token_tile=1024):
    """indices: int32 [len, batch, 1+nfeat] -> float32 [len, batch, EMB_SIZE]."""
    length, batch, nfeat = indices.shape
    assert nfeat == 1 + len(feat_tables)
    assert pe_table.shape[0] >= length
    n_tok = length * batch

    tbl, emb_size = build_combined_table(word_table, feat_tables, pe_table)
    k_pad, e_pad = tbl.shape

    # --- host-side index fusion --------------------------------------------
    # per-column row offsets into the combined table
    offsets = [0]
    off = word_table.shape[0]
    for t in feat_tables:
        offsets.append(off)
        off += t.shape[0]
    pe_offset = off                                            # PE rows start here

    idx = indices.reshape(n_tok, nfeat).astype(jnp.int32)
    idx = idx + jnp.asarray(offsets, dtype=jnp.int32)[None, :]
    # sequence position of token n = l*batch + b  ->  l ; precomputed here so
    # the kernel needs no integer divide.
    pos = jnp.repeat(jnp.arange(length, dtype=jnp.int32), batch) + pe_offset
    idx_full = jnp.concatenate([idx, pos[:, None]], axis=1)    # (N, nfeat+1)
    ncols = nfeat + 1

    t_tile = min(token_tile, n_tok)
    assert n_tok % t_tile == 0
    assert (t_tile % 8 == 0) or (t_tile == n_tok)

    flops = 2 * n_tok * k_pad * e_pad
    bytes_accessed = idx_full.size * 4 + tbl.size * 2 + n_tok * e_pad * 4

    out = pl.pallas_call(
        _embedding_kernel,
        out_shape=jax.ShapeDtypeStruct((n_tok, e_pad), jnp.float32),
        grid=(n_tok // t_tile,),
        in_specs=[
            pl.BlockSpec((t_tile, ncols), lambda i: (i, 0)),   # fused indices
            pl.BlockSpec((k_pad, e_pad), lambda i: (0, 0)),    # table, VMEM-resident
        ],
        out_specs=pl.BlockSpec((t_tile, e_pad), lambda i: (i, 0)),  # lane-dense
        compiler_params=pltpu.CompilerParams(
            dimension_semantics=("parallel",)),
        cost_estimate=pl.CostEstimate(flops=int(flops), transcendentals=0,
                                      bytes_accessed=int(bytes_accessed)),
    )(idx_full, tbl)

    # TODO(synk): downstream consumers that can handle the padded 128-lane
    # layout should take `out` directly and skip this extra slice/copy.
    return out[:, :emb_size].reshape(length, batch, emb_size)


if __name__ == "__main__":
    key = jax.random.PRNGKey(0)
    k_w, k_f, k_iw, k_if = jax.random.split(key, 4)

    # deterministic parameter init (nn.Embedding weights ~ N(0,1), pad row = 0)
    word_table = jax.random.normal(k_w, (WORD_VOCAB, WORD_VEC_SIZE), jnp.float32)
    word_table = word_table.at[WORD_PAD].set(0.0)
    feat_table = jax.random.normal(k_f, (FEAT_VOCABS[0], FEAT_DIMS[0]), jnp.float32)
    feat_table = feat_table.at[FEAT_PADS[0]].set(0.0)
    feat_tables = [feat_table]

    pe_table = make_positional_encoding(SEQ_LEN, EMB_SIZE)

    # input indices [len, batch, nfeat]; force a couple of padding tokens
    idx_w = jax.random.randint(k_iw, (SEQ_LEN, BATCH), 0, WORD_VOCAB, jnp.int32)
    idx_f = jax.random.randint(k_if, (SEQ_LEN, BATCH), 0, FEAT_VOCABS[0], jnp.int32)
    idx_w = idx_w.at[0, 0].set(WORD_PAD)
    idx_f = idx_f.at[0, 0].set(FEAT_PADS[0])
    indices = jnp.stack([idx_w, idx_f], axis=-1)          # (L, B, 2)

    out = embeddings_forward(indices, word_table, feat_tables, pe_table)
    out = jax.block_until_ready(out)

    # pure-JAX f32 reference of the same forward pass
    ref_w = jnp.take(word_table, idx_w, axis=0)           # (L,B,Dw)
    ref_parts = [ref_w] + [jnp.take(t, idx_f, axis=0) for t in feat_tables]
    ref = jnp.concatenate(ref_parts, axis=-1) + pe_table[:SEQ_LEN, None, :]

    assert out.shape == (SEQ_LEN, BATCH, EMB_SIZE)
    # table is bf16-rounded on the MXU path (~2^-9 rel); loosen tolerance
    assert jnp.allclose(out, ref, atol=2e-2, rtol=2e-2)

    print("KERNEL_OK")
</pallas_src>

<mosaic_0001>
module attributes {stable_mosaic.version = 11 : i64} {
  func.func @_embedding_kernel(%arg0: i32, %arg1: memref<16x3xi32, #tpu.memory_space<vmem>>, %arg2: memref<128x128xbf16, #tpu.memory_space<vmem>>, %arg3: memref<16x128xf32, #tpu.memory_space<vmem>>) attributes {dimension_semantics = [#tpu.dimension_semantics<parallel>], iteration_bounds = array<i64: 1>, scalar_prefetch = 0 : i64, scratch_operands = 0 : i64, tpu.core_type = #tpu.core_type<tc>, window_params = [{transform_indices = @transform_0, window_bounds = array<i64: 16, 3>}, {pipeline_mode = #tpu.pipeline_mode<synchronous>, transform_indices = @transform_1, window_bounds = array<i64: 128, 128>}, {transform_indices = @transform_2, window_bounds = array<i64: 16, 128>}]} {
    %c0 = arith.constant 0 : index
    %c0_0 = arith.constant 0 : index
    %0 = vector.load %arg1[%c0, %c0_0] : memref<16x3xi32, #tpu.memory_space<vmem>>, vector<16x3xi32>
    %1 = tpu.iota {dimensions = array<i32: 1>} : vector<16x128xi32>
    %2 = vector.extract_strided_slice %0 {offsets = [0, 0], sizes = [16, 1], strides = [1, 1]} : vector<16x3xi32> to vector<16x1xi32>
    %3 = vector.broadcast %2 : vector<16x1xi32> to vector<16x128xi32>
    %4 = arith.cmpi eq, %1, %3 : vector<16x128xi32>
    %5 = vector.extract_strided_slice %0 {offsets = [0, 1], sizes = [16, 1], strides = [1, 1]} : vector<16x3xi32> to vector<16x1xi32>
    %6 = vector.broadcast %5 : vector<16x1xi32> to vector<16x128xi32>
    %7 = arith.cmpi eq, %1, %6 : vector<16x128xi32>
    %8 = arith.ori %4, %7 : vector<16x128xi1>
    %9 = vector.extract_strided_slice %0 {offsets = [0, 2], sizes = [16, 1], strides = [1, 1]} : vector<16x3xi32> to vector<16x1xi32>
    %10 = vector.broadcast %9 : vector<16x1xi32> to vector<16x128xi32>
    %11 = arith.cmpi eq, %1, %10 : vector<16x128xi32>
    %12 = arith.ori %8, %11 : vector<16x128xi1>
    %13 = arith.extui %12 : vector<16x128xi1> to vector<16x128xi32>
    %14 = arith.sitofp %13 : vector<16x128xi32> to vector<16x128xf32>
    %15 = arith.truncf %14 : vector<16x128xf32> to vector<16x128xbf16>
    %c0_1 = arith.constant 0 : index
    %c0_2 = arith.constant 0 : index
    %16 = vector.load %arg2[%c0_1, %c0_2] : memref<128x128xbf16, #tpu.memory_space<vmem>>, vector<128x128xbf16>
    %cst = arith.constant dense<0.000000e+00> : vector<16x128xf32>
    %17 = tpu.matmul %15, %16, %cst {dimension_numbers = #tpu.dot_dimension_numbers<[1], [0], [0], [1], [0, 0, 1, 1], [], []>} : vector<16x128xbf16>, vector<128x128xbf16>, vector<16x128xf32> -> vector<16x128xf32>
    %c0_3 = arith.constant 0 : index
    %c0_4 = arith.constant 0 : index
    %18 = vector.load %arg3[%c0_3, %c0_4] : memref<16x128xf32, #tpu.memory_space<vmem>>, vector<16x128xf32>
    tpu.vector_store %arg3[%c0_3, %c0_4], %17 {strides = array<i32>} : memref<16x128xf32, #tpu.memory_space<vmem>>, vector<16x128xf32>,
    return
  }
  func.func @transform_0(%arg0: i32) -> (i32, i32) {
    %c0_i32 = arith.constant 0 : i32
    %c0_i32_0 = arith.constant 0 : i32
    return %arg0, %c0_i32 : i32, i32
  }
  func.func @transform_1(%arg0: i32) -> (i32, i32) {
    %c0_i32 = arith.constant 0 : i32
    %c0_i32_0 = arith.constant 0 : i32
    %c0_i32_1 = arith.constant 0 : i32
    return %c0_i32, %c0_i32_0 : i32, i32
  }
  func.func @transform_2(%arg0: i32) -> (i32, i32) {
    %c0_i32 = arith.constant 0 : i32
    %c0_i32_0 = arith.constant 0 : i32
    return %arg0, %c0_i32 : i32, i32
  }
}

</mosaic_0001>

<llo_original>
// kernel: tpu_custom_call.1
$region0: #{tpu_custom_call.1}
  #allocation0 [shape = 'u32[]', space=smem, size = 0x4, offset = 0x4, fixed_abs, tag = 'smem constant byte address 0x4 - core index']
  #allocation1 [shape = 'u32[72,128]{1,0:T(1,128)}', space=vmem, size = 0x9000, scoped, tag = 'internal scratch']
  %s0 = inlined_call_operand.vmem [shape: s32[16,3], index: 0, kind: input, shape index: {}]
  %s1 = inlined_call_operand.hbm [shape: bf16[128,128], index: 1, kind: input, shape index: {}]
  %s2 = inlined_call_operand.hbm [shape: f32[16,128], index: 2, kind: output, shape index: {}]
  %s3 = sld [smem:[#allocation0]]
  $region22: #{tpu_custom_call.1} parent=0
    _
  %s5 = ssub.s32 1, %s3
  %s6 = scalar_select 0, %s5, %s3
  $region1: #{tpu_custom_call.1} parent=0
    #allocation2 [shape = 'u8[32768]{0}', space=vmem, size = 0x8000, scoped, tag = 'input window, operand 1, single buffered']
    #allocation3 [shape = 's32[1]{0}', space=sflag, size = 0x4, scoped, tag = 'scoped memory for tpu_custom_call.1']
    #allocation4 [shape = 's32[1]{0}', space=sflag, size = 0x4, scoped, tag = 'scoped memory for tpu_custom_call.1']
    #allocation5 [shape = 'u8[8192]{0}', space=vmem, size = 0x2000, scoped, tag = 'output window, operand 0, single buffered']
    %7 = vsyncpa [#allocation3], 0
    %8 = vsyncpa [#allocation4], 0
    // Predicated region
    $region2: #{tpu_custom_call.1} parent=1 // pred_check
      _
    $region3: #{tpu_custom_call.1} parent=1 // pred_check_branch
      %10 = sbr.rel (0) target = $region5
    $region4: #{tpu_custom_call.1} parent=1 // pred_region
      _
    $region5: #{tpu_custom_call.1} parent=1 // pred_fallthru
      _
    // Predicated region
    $region6: #{tpu_custom_call.1} parent=1 // pred_check
      _
    $region7: #{tpu_custom_call.1} parent=1 // pred_check_branch
      %12 = sbr.rel (0) target = $region9
    $region8: #{tpu_custom_call.1} parent=1 // pred_region
      %14 = vsyncadd [#allocation3], 0
      %s15 = sshll.u32 %s1, 4
      %s16 = int_to_ptr.hbm [resolvable:$true] %s15
      %s17 = sshll.u32 [#allocation2], 4
      %s18 = int_to_ptr.vmem [resolvable:$true] %s17
      %23 = dma.hbm_to_vmem [thread:$0]  %s16, 1024, %s18, [#allocation3], 64, 64, 4
    $region9: #{tpu_custom_call.1} parent=1 // pred_fallthru
      _
    // Predicated region
    $region10: #{tpu_custom_call.1} parent=1 // pred_check
      _
    $region11: #{tpu_custom_call.1} parent=1 // pred_check_branch
      %25 = sbr.rel (0) target = $region13
    $region12: #{tpu_custom_call.1} parent=1 // pred_region
      %27 = dma.done [#allocation3], 1024
    $region13: #{tpu_custom_call.1} parent=1 // pred_fallthru
      _
    %v28 = vld [vmem:[%s0] sm:$0xff]
    %v29 = vld [vmem:[%s0 + $0x8] sm:$0xff]
    %v30 = vlaneseq
    %v31 = vand.u32 %v30, 127
    %32 = vset.pattern.permute.xlu0 0
    %33 = vperm.xlu0 %32, %v28
    %v34 = vpop.permute.xlu0 %33
    %35 = vset.pattern.permute.xlu0 0
    %36 = vperm.xlu0 %35, %v29
    %v37 = vpop.permute.xlu0 %36
    %vm38 = vcmp.eq.s32.totalorder %v31, %v34
    %vm39 = vcmp.eq.s32.totalorder %v31, %v37
    %40 = vset.pattern.permute.xlu0 1
    %41 = vperm.xlu0 %40, %v28
    %v42 = vpop.permute.xlu0 %41
    %43 = vset.pattern.permute.xlu0 1
    %44 = vperm.xlu0 %43, %v29
    %v45 = vpop.permute.xlu0 %44
    %vm46 = vcmp.eq.s32.totalorder %v31, %v42
    %vm47 = vcmp.eq.s32.totalorder %v31, %v45
    %vm48 = vmor %vm38, %vm46
    %vm49 = vmor %vm39, %vm47
    %50 = vset.pattern.permute.xlu0 2
    %51 = vperm.xlu0 %50, %v28
    %v52 = vpop.permute.xlu0 %51
    %53 = vset.pattern.permute.xlu0 2
    %54 = vperm.xlu0 %53, %v29
    %v55 = vpop.permute.xlu0 %54
    %vm56 = vcmp.eq.s32.totalorder %v31, %v52
    %vm57 = vcmp.eq.s32.totalorder %v31, %v55
    %vm58 = vmor %vm48, %vm56
    %vm59 = vmor %vm49, %vm57
    %v60 = vsel %vm58, 1, 0
    %v61 = vsel %vm59, 1, 0
    %v62 = vcvt.s32.f32 %v60
    %v63 = vcvt.s32.f32 %v61
    %v64 = vpack.c.bf16 %v63, %v62
    %v65 = vld [vmem:[#allocation2] sm:$0xf]
    %v66 = vld [vmem:[#allocation2 + $0x4] sm:$0xf]
    %v67 = vld [vmem:[#allocation2 + $0x8] sm:$0xf]
    %v68 = vld [vmem:[#allocation2 + $0xc] sm:$0xf]
    %v69 = vld [vmem:[#allocation2 + $0x10] sm:$0xf]
    %v70 = vld [vmem:[#allocation2 + $0x14] sm:$0xf]
    %v71 = vld [vmem:[#allocation2 + $0x18] sm:$0xf]
    %v72 = vld [vmem:[#allocation2 + $0x1c] sm:$0xf]
    %v73 = vld [vmem:[#allocation2 + $0x20] sm:$0xf]
    %v74 = vld [vmem:[#allocation2 + $0x24] sm:$0xf]
    %v75 = vld [vmem:[#allocation2 + $0x28] sm:$0xf]
    %v76 = vld [vmem:[#allocation2 + $0x2c] sm:$0xf]
    %v77 = vld [vmem:[#allocation2 + $0x30] sm:$0xf]
    %v78 = vld [vmem:[#allocation2 + $0x34] sm:$0xf]
    %v79 = vld [vmem:[#allocation2 + $0x38] sm:$0xf]
    %v80 = vld [vmem:[#allocation2 + $0x3c] sm:$0xf]
    %v97 = vunpack.c.l.b16 %v65
    %v98 = vunpack.c.l.b16 %v66
    %v99 = vunpack.c.l.b16 %v67
    %v100 = vunpack.c.l.b16 %v68
    %v101 = vunpack.c.l.b16 %v69
    %v102 = vunpack.c.l.b16 %v70
    %v103 = vunpack.c.l.b16 %v71
    %v104 = vunpack.c.l.b16 %v72
    %v105 = vunpack.c.l.b16 %v73
    %v106 = vunpack.c.l.b16 %v74
    %v107 = vunpack.c.l.b16 %v75
    %v108 = vunpack.c.l.b16 %v76
    %v109 = vunpack.c.l.b16 %v77
    %v110 = vunpack.c.l.b16 %v78
    %v111 = vunpack.c.l.b16 %v79
    %v112 = vunpack.c.l.b16 %v80
    %v113 = vpack.c.b16 %v98, %v97
    %v114 = vpack.c.b16 %v100, %v99
    %v115 = vpack.c.b16 %v102, %v101
    %v116 = vpack.c.b16 %v104, %v103
    %v117 = vpack.c.b16 %v106, %v105
    %v118 = vpack.c.b16 %v108, %v107
    %v119 = vpack.c.b16 %v110, %v109
    %v120 = vpack.c.b16 %v112, %v111
    %129 = vmatpush.bf16.msra.mxu0 %v120
    %130 = vmatpush.bf16.msra.mxu0 %v119
    %131 = vmatpush.bf16.msra.mxu0 %v118
    %132 = vmatpush.bf16.msra.mxu0 %v117
    %133 = vmatpush.bf16.msra.mxu0 %v116
    %134 = vmatpush.bf16.msra.mxu0 %v115
    %135 = vmatpush.bf16.msra.mxu0 %v114
    %136 = vmatpush.bf16.msra.mxu0 %v113
    %137 = vmatmul.bf16.gmra.mxu0 %v64
    %v138 = vpop.f32.mrf.mxu0
    %v139 = vadd.f32 0.0, %v138
    %v140 = vpop.f32.mrf.mxu0
    %v141 = vadd.f32 0.0, %v140
    %142 = vdwg.mxu0
    %143 = vst [vmem:[#allocation5] sm:$0xff] %v139
    %144 = vst [vmem:[#allocation5 + $0x8] sm:$0xff] %v141
    // Predicated region
    $region14: #{tpu_custom_call.1} parent=1 // pred_check
      _
    $region15: #{tpu_custom_call.1} parent=1 // pred_check_branch
      %146 = sbr.rel (0) target = $region17
    $region16: #{tpu_custom_call.1} parent=1 // pred_region
      %148 = vsyncadd [#allocation4], 0
      %s149 = sshll.u32 [#allocation5], 4
      %s150 = int_to_ptr.vmem [resolvable:$true] %s149
      %s151 = sshll.u32 %s2, 4
      %s152 = int_to_ptr.hbm [resolvable:$true] %s151
      %157 = dma.vmem_to_hbm [thread:$0]  %s150, 256, %s152, [#allocation4], 128, 128, 8
    $region17: #{tpu_custom_call.1} parent=1 // pred_fallthru
      _
    // Predicated region
    $region18: #{tpu_custom_call.1} parent=1 // pred_check
      _
    $region19: #{tpu_custom_call.1} parent=1 // pred_check_branch
      %159 = sbr.rel (0) target = $region21
    $region20: #{tpu_custom_call.1} parent=1 // pred_region
      %161 = dma.done [#allocation4], 256
    $region21: #{tpu_custom_call.1} parent=1 // pred_fallthru
      _
    %162 = vsyncpa [#allocation3], 1
    %163 = vsyncpa [#allocation4], 1

</llo_original>
